<compile_context>
chip_gen: v6e
topology: v6e:2x2x1
jax: 0.10.0
libtpu: 0.0.40
codegen_flags: <defaults>
</compile_context>

<pallas_src>
import functools

import jax
import jax.numpy as jnp
from jax.experimental import pallas as pl
from jax.experimental.pallas import tpu as pltpu


def _blur_kernel(idx_ref, patches_ref, w_ref, alpha_ref, out_ref):
    """Single-program kernel: conv-as-matmul on the MXU + alpha blend on the VPU.

    idx_ref     : SMEM (1,)            scalar-prefetched patch index (consumed
                                       only by the alpha BlockSpec index_map)
    patches_ref : VMEM (K^2, C*HO*WO)  lane-dense im2col patch matrix
    w_ref       : VMEM (L, K^2)        per-layer correlation weights
    alpha_ref   : VMEM (L, HO*WO)      alpha mattes of patch `idx` (P dim squeezed)
    out_ref     : VMEM (1, C*HO*WO)    lane-dense output slab
    """
    del idx_ref  # consumed only by the alpha index_map

    hw = alpha_ref.shape[-1]           # HO*WO  (multiple of 128)
    n = out_ref.shape[-1]              # C*HO*WO
    c = n // hw                        # color channels

    # blurs[l, m] = sum_k w[l, k] * patches[k, m]  -> one short MXU pass, f32 acc.
    blurs = jnp.dot(w_ref[...], patches_ref[...],
                    preferred_element_type=jnp.float32)           # (L, C*HO*WO)

    # In-kernel channel replication of alpha along lanes (256-lane aligned copy),
    # then blurry[m] = sum_l blurs[l, m] * alpha[l, m]  -> VPU mul + sublane reduce.
    alpha_rep = jnp.tile(alpha_ref[...], (1, c))                  # (L, C*HO*WO)
    blended = jnp.sum(blurs * alpha_rep, axis=0, keepdims=True)   # (1, C*HO*WO)
    out_ref[...] = blended.astype(out_ref.dtype)


@jax.jit
def _parallax_ic_blur_jit(img, conv_weights, alpha_mattes, idx):
    """Jitted forward: im2col + pallas_call compiled into one executable."""
    B, C, H_in, W_in = img.shape
    L, KS, KS2 = conv_weights.shape
    P, La, HO, WO = alpha_mattes.shape
    assert KS == KS2 and La == L
    assert HO == H_in - KS + 1 and WO == W_in - KS + 1
    assert B == 1, "forward()'s .view on alpha_mattes only makes sense for B == 1"

    HW = HO * WO                 # 256 -> multiple of 128, lane-dense
    N = C * HW                   # 768 -> lane-dense output slab
    K2 = KS * KS

    # Clamp + shape the scalar-prefetched patch index (no OOB DMA possible).
    idx_arr = jnp.clip(idx.astype(jnp.int32), 0, P - 1).reshape(1)

    # --- layout plumbing fused into this jit (no FLOPs moved out of the kernel) --
    # im2col: patches[k = i*KS + j, (c, y, x)] = img[0, c, y + i, x + j]
    patches = jnp.stack(
        [img[:, :, i:i + HO, j:j + WO].reshape(N)
         for i in range(KS) for j in range(KS)],
        axis=0).astype(jnp.float32)                               # (K^2, N)

    # weights as a small VMEM tile for the MXU matmul
    w_mat = conv_weights.reshape(L, K2).astype(jnp.float32)       # (L, K^2)

    # alpha flattened only (no channel replication, no HBM broadcast)
    alpha_flat = alpha_mattes.reshape(P, L, HW).astype(jnp.float32)

    out_flat = pl.pallas_call(
        _blur_kernel,
        out_shape=jax.ShapeDtypeStruct((B, N), jnp.float32),
        grid_spec=pltpu.PrefetchScalarGridSpec(
            num_scalar_prefetch=1,
            grid=(1,),                                  # single sequential step
            in_specs=[
                # whole lane-dense patch matrix
                pl.BlockSpec((K2, N), lambda g, idx_ref: (0, 0)),
                # whole weight tile (VMEM, feeds the MXU)
                pl.BlockSpec((L, K2), lambda g, idx_ref: (0, 0)),
                # alpha mattes of the requested patch, selected via scalar
                # prefetch; P dim is block-size-1 and squeezed out of the view.
                pl.BlockSpec((pl.Squeezed(), L, HW),
                             lambda g, idx_ref: (idx_ref[0], 0, 0)),
            ],
            out_specs=pl.BlockSpec((B, N), lambda g, idx_ref: (0, 0)),
        ),
        compiler_params=pltpu.CompilerParams(
            dimension_semantics=("arbitrary",)),        # single core; no sharding
    )(idx_arr, patches, w_mat, alpha_flat)

    return out_flat.reshape(B, C, HO, WO).astype(img.dtype)


def parallax_ic_blur(img, conv_weights, alpha_mattes, idx):
    """Public wrapper.

    img          : (B, C, H_in, W_in) float32, B == 1
    conv_weights : (L, KS, KS)  correlation weights shared by the 3 color groups
                   (== torch.flip(kernels, (1, 2)), i.e. the module's conv.weight)
    alpha_mattes : (P, L, HO, WO)
    idx          : python int / int32 scalar (patch index)
    """
    idx_dev = jnp.asarray(idx, dtype=jnp.int32)
    return _parallax_ic_blur_jit(img, conv_weights, alpha_mattes, idx_dev)


def reference(img, conv_weights, alpha_mattes, idx):
    """Plain-JAX replica of the PyTorch forward (grouped conv + alpha blend)."""
    B, C, H_in, W_in = img.shape
    L, KS, _ = conv_weights.shape
    # weights_init(): the same L filters replicated for the 3 color groups.
    w = jnp.broadcast_to(conv_weights[None], (C, L, KS, KS)).reshape(C * L, 1, KS, KS)
    blurs = jax.lax.conv_general_dilated(
        img, w, window_strides=(1, 1), padding="VALID",
        dimension_numbers=("NCHW", "OIHW", "NCHW"),
        feature_group_count=C)
    HO, WO = blurs.shape[2:]
    blurs = blurs.reshape(B, C, L, HO, WO)
    alpha = alpha_mattes[idx].reshape(B, 1, L, HO, WO)
    return jnp.sum(blurs * alpha, axis=2)


def build_parameters(key, L=4, KS=5, HO=16, WO=16, num_patches=6):
    """Deterministic synthetic stand-in for the module's __init__ pipeline."""
    k_kern, k_alpha = jax.random.split(key)
    # "kernels" (L, KS, KS): positive, normalized blur kernels
    kernels = jax.random.uniform(k_kern, (L, KS, KS), dtype=jnp.float32)
    kernels = kernels / jnp.sum(kernels, axis=(1, 2), keepdims=True)
    # weights_init(): flip spatially -> stored conv weights (shared by all groups)
    conv_weights = jnp.flip(kernels, axis=(1, 2))
    # alpha mattes per patch: soft partition over layers (sum_l == 1)
    logits = jax.random.normal(k_alpha, (num_patches, L, HO, WO), dtype=jnp.float32)
    alpha_mattes = jax.nn.softmax(logits, axis=1)
    return conv_weights, alpha_mattes


if __name__ == "__main__":
    B, C, L, KS = 1, 3, 4, 5
    HO = WO = 16                       # patch_size == conv output size
    H_in, W_in = HO + KS - 1, WO + KS - 1
    num_patches, idx = 6, 2

    key = jax.random.PRNGKey(0)
    k_img, k_par = jax.random.split(key)
    img = jax.random.normal(k_img, (B, C, H_in, W_in), dtype=jnp.float32)
    conv_weights, alpha_mattes = build_parameters(
        k_par, L=L, KS=KS, HO=HO, WO=WO, num_patches=num_patches)

    out = parallax_ic_blur(img, conv_weights, alpha_mattes, idx)
    out = jax.block_until_ready(out)

    ref = reference(img, conv_weights, alpha_mattes, idx)
    assert out.shape == (B, C, HO, WO)
    max_err = jnp.max(jnp.abs(out - ref))
    assert jnp.allclose(out, ref, atol=1e-4, rtol=1e-4), f"max abs err {max_err}"

    print("KERNEL_OK")
</pallas_src>

<mosaic_0001>
module attributes {stable_mosaic.version = 11 : i64} {
  func.func @_blur_kernel(%arg0: i32, %arg1: memref<1xi32, #tpu.memory_space<smem>>, %arg2: memref<25x768xf32, #tpu.memory_space<vmem>>, %arg3: memref<4x25xf32, #tpu.memory_space<vmem>>, %arg4: memref<1x4x256xf32, #tpu.memory_space<vmem>>, %arg5: memref<1x768xf32, #tpu.memory_space<vmem>>) attributes {dimension_semantics = [#tpu.dimension_semantics<arbitrary>], iteration_bounds = array<i64: 1>, scalar_prefetch = 1 : i64, scratch_operands = 0 : i64, tpu.core_type = #tpu.core_type<tc>, window_params = [{pipeline_mode = #tpu.pipeline_mode<synchronous>, transform_indices = @transform_0, window_bounds = array<i64: 25, 768>}, {pipeline_mode = #tpu.pipeline_mode<synchronous>, transform_indices = @transform_1, window_bounds = array<i64: 4, 25>}, {transform_indices = @transform_2, window_bounds = array<i64: 1, 4, 256>}, {pipeline_mode = #tpu.pipeline_mode<synchronous>, transform_indices = @transform_3, window_bounds = array<i64: 1, 768>}]} {
    %c0 = arith.constant 0 : index
    %c0_0 = arith.constant 0 : index
    %0 = vector.load %arg3[%c0, %c0_0] : memref<4x25xf32, #tpu.memory_space<vmem>>, vector<4x25xf32>
    %c0_1 = arith.constant 0 : index
    %c0_2 = arith.constant 0 : index
    %1 = vector.load %arg2[%c0_1, %c0_2] : memref<25x768xf32, #tpu.memory_space<vmem>>, vector<25x768xf32>
    %cst = arith.constant dense<0.000000e+00> : vector<4x768xf32>
    %2 = tpu.matmul %0, %1, %cst {dimension_numbers = #tpu.dot_dimension_numbers<[1], [0], [0], [1], [0, 0, 1, 1], [], []>} : vector<4x25xf32>, vector<25x768xf32>, vector<4x768xf32> -> vector<4x768xf32>
    %c0_3 = arith.constant 0 : index
    %c0_4 = arith.constant 0 : index
    %c0_5 = arith.constant 0 : index
    %3 = vector.load %arg4[%c0_3, %c0_4, %c0_5] : memref<1x4x256xf32, #tpu.memory_space<vmem>>, vector<1x4x256xf32>
    %4 = vector.shape_cast %3 : vector<1x4x256xf32> to vector<4x256xf32>
    %5 = tpu.concatenate %4, %4, %4 in 1 : vector<4x256xf32>, vector<4x256xf32>, vector<4x256xf32> -> vector<4x768xf32>
    %6 = arith.mulf %2, %5 : vector<4x768xf32>
    %cst_6 = arith.constant dense<0.000000e+00> : vector<768xf32>
    %7 = vector.multi_reduction <add>, %6, %cst_6 [0] : vector<4x768xf32> to vector<768xf32>
    %8 = vector.shape_cast %7 : vector<768xf32> to vector<1x768xf32>
    %c0_7 = arith.constant 0 : index
    %c0_8 = arith.constant 0 : index
    %9 = vector.load %arg5[%c0_7, %c0_8] : memref<1x768xf32, #tpu.memory_space<vmem>>, vector<1x768xf32>
    tpu.vector_store %arg5[%c0_7, %c0_8], %8 {strides = array<i32>} : memref<1x768xf32, #tpu.memory_space<vmem>>, vector<1x768xf32>,
    return
  }
  func.func @transform_0(%arg0: i32, %arg1: memref<1xi32, #tpu.memory_space<smem>>) -> (i32, i32) {
    %c0_i32 = arith.constant 0 : i32
    %c0_i32_0 = arith.constant 0 : i32
    %c0_i32_1 = arith.constant 0 : i32
    return %c0_i32, %c0_i32_0 : i32, i32
  }
  func.func @transform_1(%arg0: i32, %arg1: memref<1xi32, #tpu.memory_space<smem>>) -> (i32, i32) {
    %c0_i32 = arith.constant 0 : i32
    %c0_i32_0 = arith.constant 0 : i32
    %c0_i32_1 = arith.constant 0 : i32
    return %c0_i32, %c0_i32_0 : i32, i32
  }
  func.func @transform_2(%arg0: i32, %arg1: memref<1xi32, #tpu.memory_space<smem>>) -> (i32, i32, i32) {
    %c0 = arith.constant 0 : index
    %0 = memref.load %arg1[%c0] : memref<1xi32, #tpu.memory_space<smem>>
    %c0_i32 = arith.constant 0 : i32
    %c0_i32_0 = arith.constant 0 : i32
    %c0_i32_1 = arith.constant 0 : i32
    return %0, %c0_i32, %c0_i32_0 : i32, i32, i32
  }
  func.func @transform_3(%arg0: i32, %arg1: memref<1xi32, #tpu.memory_space<smem>>) -> (i32, i32) {
    %c0_i32 = arith.constant 0 : i32
    %c0_i32_0 = arith.constant 0 : i32
    %c0_i32_1 = arith.constant 0 : i32
    return %c0_i32, %c0_i32_0 : i32, i32
  }
}

</mosaic_0001>

<llo_original>
// kernel: _parallax_ic_blur_jit.1
$region0: #{_parallax_ic_blur_jit.1}
  #allocation0 [shape = 'u32[]', space=smem, size = 0x4, offset = 0x4, fixed_abs, tag = 'smem constant byte address 0x4 - core index']
  #allocation1 [shape = 'u32[144,128]{1,0:T(1,128)}', space=vmem, size = 0x12000, scoped, tag = 'internal scratch']
  #allocation2 [shape = 's32[1]{0}', space=sflag, size = 0x4, scoped, tag = 'scoped memory for _parallax_ic_blur_jit.1']
  #allocation3 [shape = 's32[1]{0:T(128)S(6)}', space=smem, size = 0x200, scoped, tag = 'prefetched SMEM operand 0']
  %s0 = inlined_call_operand.<no memory space> [shape: s32[1], index: 0, kind: input, shape index: {}]
  %s1 = inlined_call_operand.vmem [shape: f32[25,768], index: 1, kind: input, shape index: {}]
  %s2 = inlined_call_operand.vmem [shape: f32[4,25], index: 2, kind: input, shape index: {}]
  %s3 = inlined_call_operand.vmem [shape: f32[6,4,256], index: 3, kind: input, shape index: {}]
  %s4 = inlined_call_operand.vmem [shape: f32[1,768], index: 4, kind: output, shape index: {}]
  %s5 = sld [smem:[#allocation0]]
  $region22: #{_parallax_ic_blur_jit.1} parent=0
    _
  %s7 = ssub.s32 1, %s5
  %s8 = scalar_select 0, %s7, %s5
  %9 = sst [smem:[#allocation3]] %s0
  // Predicated region
  $region2: #{_parallax_ic_blur_jit.1} parent=0 // pred_check
    _
  $region3: #{_parallax_ic_blur_jit.1} parent=0 // pred_check_branch
    %11 = sbr.rel (0) target = $region5
  $region4: #{_parallax_ic_blur_jit.1} parent=0 // pred_region
    _
  $region5: #{_parallax_ic_blur_jit.1} parent=0 // pred_fallthru
    _
  // Predicated region
  $region6: #{_parallax_ic_blur_jit.1} parent=0 // pred_check
    _
  $region7: #{_parallax_ic_blur_jit.1} parent=0 // pred_check_branch
    %13 = sbr.rel (0) target = $region9
  $region8: #{_parallax_ic_blur_jit.1} parent=0 // pred_region
    _
  $region9: #{_parallax_ic_blur_jit.1} parent=0 // pred_fallthru
    _
  // Predicated region
  $region10: #{_parallax_ic_blur_jit.1} parent=0 // pred_check
    _
  $region11: #{_parallax_ic_blur_jit.1} parent=0 // pred_check_branch
    %15 = sbr.rel (0) target = $region13
  $region12: #{_parallax_ic_blur_jit.1} parent=0 // pred_region
    %s16 = sld [smem:[#allocation3]]
    %p17 = scmp.lt.s32.totalorder %s16, 5
    %s18 = scalar_select %p17, %s16, 5
    %s19 = smul.addr %s18, 2
    %s20 = smul.addr %s19, 4
    %s21 = scalar_lea.vmem %s3, %s20
    %s22 = sld [smem:[#allocation3]]
  $region13: #{_parallax_ic_blur_jit.1} parent=0 // pred_fallthru
    _
  %s23 = sld [smem:[#allocation3]]
  %p24 = scmp.lt.s32.totalorder %s23, 5
  %s25 = scalar_select %p24, %s23, 5
  %s26 = smul.addr %s25, 2
  %s27 = smul.addr %s26, 4
  %s28 = scalar_lea.vmem %s3, %s27
  %s29 = sld [smem:[#allocation3]]
  %p30 = scmp.lt.s32.totalorder %s29, 5
  %s31 = scalar_select %p30, %s29, 5
  %s32 = smul.addr %s31, 2
  %s33 = smul.addr %s32, 4
  %s34 = scalar_lea.vmem %s3, %s33
  %s35 = sld [smem:[#allocation3]]
  %v36 = vld [vmem:[%s2] sm:$0xf]
  %v37 = vld [vmem:[%s1] sm:$0xff]
  %v38 = vld [vmem:[%s1 + $0x8] sm:$0xff]
  %v39 = vld [vmem:[%s1 + $0x10] sm:$0xff]
  %v40 = vld [vmem:[%s1 + $0x18] sm:$0xff]
  %v41 = vld [vmem:[%s1 + $0x20] sm:$0xff]
  %v42 = vld [vmem:[%s1 + $0x28] sm:$0xff]
  %v43 = vld [vmem:[%s1 + $0x30] sm:$0xff]
  %v44 = vld [vmem:[%s1 + $0x38] sm:$0xff]
  %v45 = vld [vmem:[%s1 + $0x40] sm:$0xff]
  %v46 = vld [vmem:[%s1 + $0x48] sm:$0xff]
  %v47 = vld [vmem:[%s1 + $0x50] sm:$0xff]
  %v48 = vld [vmem:[%s1 + $0x58] sm:$0xff]
  %v49 = vld [vmem:[%s1 + $0x60] sm:$0xff]
  %v50 = vld [vmem:[%s1 + $0x68] sm:$0xff]
  %v51 = vld [vmem:[%s1 + $0x70] sm:$0xff]
  %v52 = vld [vmem:[%s1 + $0x78] sm:$0xff]
  %v53 = vld [vmem:[%s1 + $0x80] sm:$0xff]
  %v54 = vld [vmem:[%s1 + $0x88] sm:$0xff]
  %v55 = vld [vmem:[%s1 + $0x90] sm:$0x1]
  %v56 = vld [vmem:[%s1 + $0x98] sm:$0x1]
  %v57 = vld [vmem:[%s1 + $0xa0] sm:$0x1]
  %v58 = vld [vmem:[%s1 + $0xa8] sm:$0x1]
  %v59 = vld [vmem:[%s1 + $0xb0] sm:$0x1]
  %v60 = vld [vmem:[%s1 + $0xb8] sm:$0x1]
  %vm61 = vcmask 203776
  %v63 = vsel %vm61, %v36, 0
  %vm65 = vcmask 1040384
  %v67 = vsel %vm65, %v55, 0
  %v70 = vsel %vm65, %v56, 0
  %v73 = vsel %vm65, %v57, 0
  %v76 = vsel %vm65, %v58, 0
  %v79 = vsel %vm65, %v59, 0
  %v82 = vsel %vm65, %v60, 0
  %84 = vmatprep.subr.mxu0 0.0
  %85 = vmatpush1.msra.mxu0 0.0
  %86 = vmatprep.subr.mxu0 0.0
  %87 = vmatpush1.msra.mxu0 0.0
  %88 = vmatprep.subr.mxu0 0.0
  %89 = vmatpush1.msra.mxu0 0.0
  %90 = vmatprep.subr.mxu0 0.0
  %91 = vmatpush1.msra.mxu0 0.0
  %92 = vmatprep.subr.mxu0 0.0
  %93 = vmatpush1.msra.mxu0 0.0
  %94 = vmatprep.subr.mxu0 0.0
  %95 = vmatpush1.msra.mxu0 0.0
  %96 = vmatprep.subr.mxu0 0.0
  %97 = vmatpush1.msra.mxu0 0.0
  %98 = vmatprep.subr.mxu0 0.0
  %99 = vmatpush1.msra.mxu0 0.0
  %100 = vmatprep.subr.mxu0 0.0
  %101 = vmatpush1.msra.mxu0 0.0
  %102 = vmatprep.subr.mxu0 0.0
  %103 = vmatpush1.msra.mxu0 0.0
  %104 = vmatprep.subr.mxu0 0.0
  %105 = vmatpush1.msra.mxu0 0.0
  %106 = vmatprep.subr.mxu0 0.0
  %107 = vmatpush1.msra.mxu0 0.0
  %108 = vmatprep.subr.mxu0 %v70
  %109 = vmatpush1.msra.mxu0 %v67
  %110 = vmatprep.subr.mxu0 %v50
  %111 = vmatpush1.msra.mxu0 %v49
  %112 = vmatprep.subr.mxu0 %v44
  %113 = vmatpush1.msra.mxu0 %v43
  %114 = vmatprep.subr.mxu0 %v38
  %115 = vmatpush1.msra.mxu0 %v37
  %116 = vmatprep.subr.mxu0 0.0
  %117 = vmatpush2.msra.mxu0 0.0
  %118 = vmatprep.subr.mxu0 0.0
  %119 = vmatpush2.msra.mxu0 0.0
  %120 = vmatprep.subr.mxu0 0.0
  %121 = vmatpush2.msra.mxu0 0.0
  %122 = vmatprep.subr.mxu0 0.0
  %123 = vmatpush2.msra.mxu0 0.0
  %124 = vmatprep.subr.mxu0 0.0
  %125 = vmatpush2.msra.mxu0 0.0
  %126 = vmatprep.subr.mxu0 0.0
  %127 = vmatpush2.msra.mxu0 0.0
  %128 = vmatprep.subr.mxu0 0.0
  %129 = vmatpush2.msra.mxu0 0.0
  %130 = vmatprep.subr.mxu0 0.0
  %131 = vmatpush2.msra.mxu0 0.0
  %132 = vmatprep.subr.mxu0 0.0
  %133 = vmatpush2.msra.mxu0 0.0
  %134 = vmatprep.subr.mxu0 0.0
  %135 = vmatpush2.msra.mxu0 0.0
  %136 = vmatprep.subr.mxu0 0.0
  %137 = vmatpush2.msra.mxu0 0.0
  %138 = vmatprep.subr.mxu0 0.0
  %139 = vmatpush2.msra.mxu0 0.0
  %140 = vmatprep.subr.mxu0 0.0
  %141 = vmatpush2.msra.mxu0 0.0
  %142 = vmatprep.subr.mxu0 0.0
  %143 = vmatpush2.msra.mxu0 0.0
  %144 = vmatprep.subr.mxu0 0.0
  %145 = vmatpush2.msra.mxu0 0.0
  %146 = vmatprep.subr.mxu0 0.0
  %147 = vmatpush2.msra.mxu0 0.0
  %148 = vmatprep.mubr.f32.mxu0 0.0
  %149 = vmatmul.mubr.f32.gmra.mxu0 %v63
  %v150 = vpop.f32.mrf.mxu0
  %v151 = vadd.f32 0.0, %v150
  %v152 = vpop.f32.mrf.mxu0
  %v153 = vadd.f32 0.0, %v152
  %154 = vdwg.mxu0
  %155 = vmatprep.subr.mxu0 0.0
  %156 = vmatpush1.msra.mxu0 0.0
  %157 = vmatprep.subr.mxu0 0.0
  %158 = vmatpush1.msra.mxu0 0.0
  %159 = vmatprep.subr.mxu0 0.0
  %160 = vmatpush1.msra.mxu0 0.0
  %161 = vmatprep.subr.mxu0 0.0
  %162 = vmatpush1.msra.mxu0 0.0
  %163 = vmatprep.subr.mxu0 0.0
  %164 = vmatpush1.msra.mxu0 0.0
  %165 = vmatprep.subr.mxu0 0.0
  %166 = vmatpush1.msra.mxu0 0.0
  %167 = vmatprep.subr.mxu0 0.0
  %168 = vmatpush1.msra.mxu0 0.0
  %169 = vmatprep.subr.mxu0 0.0
  %170 = vmatpush1.msra.mxu0 0.0
  %171 = vmatprep.subr.mxu0 0.0
  %172 = vmatpush1.msra.mxu0 0.0
  %173 = vmatprep.subr.mxu0 0.0
  %174 = vmatpush1.msra.mxu0 0.0
  %175 = vmatprep.subr.mxu0 0.0
  %176 = vmatpush1.msra.mxu0 0.0
  %177 = vmatprep.subr.mxu0 0.0
  %178 = vmatpush1.msra.mxu0 0.0
  %179 = vmatprep.subr.mxu0 %v76
  %180 = vmatpush1.msra.mxu0 %v73
  %181 = vmatprep.subr.mxu0 %v52
  %182 = vmatpush1.msra.mxu0 %v51
  %183 = vmatprep.subr.mxu0 %v46
  %184 = vmatpush1.msra.mxu0 %v45
  %185 = vmatprep.subr.mxu0 %v40
  %186 = vmatpush1.msra.mxu0 %v39
  %187 = vmatprep.subr.mxu0 0.0
  %188 = vmatpush2.msra.mxu0 0.0
  %189 = vmatprep.subr.mxu0 0.0
  %190 = vmatpush2.msra.mxu0 0.0
  %191 = vmatprep.subr.mxu0 0.0
  %192 = vmatpush2.msra.mxu0 0.0
  %193 = vmatprep.subr.mxu0 0.0
  %194 = vmatpush2.msra.mxu0 0.0
  %195 = vmatprep.subr.mxu0 0.0
  %196 = vmatpush2.msra.mxu0 0.0
  %197 = vmatprep.subr.mxu0 0.0
  %198 = vmatpush2.msra.mxu0 0.0
  %199 = vmatprep.subr.mxu0 0.0
  %200 = vmatpush2.msra.mxu0 0.0
  %201 = vmatprep.subr.mxu0 0.0
  %202 = vmatpush2.msra.mxu0 0.0
  %203 = vmatprep.subr.mxu0 0.0
  %204 = vmatpush2.msra.mxu0 0.0
  %205 = vmatprep.subr.mxu0 0.0
  %206 = vmatpush2.msra.mxu0 0.0
  %207 = vmatprep.subr.mxu0 0.0
  %208 = vmatpush2.msra.mxu0 0.0
  %209 = vmatprep.subr.mxu0 0.0
  %210 = vmatpush2.msra.mxu0 0.0
  %211 = vmatprep.subr.mxu0 0.0
  %212 = vmatpush2.msra.mxu0 0.0
  %213 = vmatprep.subr.mxu0 0.0
  %214 = vmatpush2.msra.mxu0 0.0
  %215 = vmatprep.subr.mxu0 0.0
  %216 = vmatpush2.msra.mxu0 0.0
  %217 = vmatprep.subr.mxu0 0.0
  %218 = vmatpush2.msra.mxu0 0.0
  %219 = vmatprep.mubr.f32.mxu0 0.0
  %220 = vmatmul.mubr.f32.gmra.mxu0 %v63
  %v221 = vpop.f32.mrf.mxu0
  %v222 = vadd.f32 0.0, %v221
  %v223 = vpop.f32.mrf.mxu0
  %v224 = vadd.f32 0.0, %v223
  %225 = vdwg.mxu0
  %226 = vmatprep.subr.mxu0 0.0
  %227 = vmatpush1.msra.mxu0 0.0
  %228 = vmatprep.subr.mxu0 0.0
  %229 = vmatpush1.msra.mxu0 0.0
  %230 = vmatprep.subr.mxu0 0.0
  %231 = vmatpush1.msra.mxu0 0.0
  %232 = vmatprep.subr.mxu0 0.0
  %233 = vmatpush1.msra.mxu0 0.0
  %234 = vmatprep.subr.mxu0 0.0
  %235 = vmatpush1.msra.mxu0 0.0
  %236 = vmatprep.subr.mxu0 0.0
  %237 = vmatpush1.msra.mxu0 0.0
  %238 = vmatprep.subr.mxu0 0.0
  %239 = vmatpush1.msra.mxu0 0.0
  %240 = vmatprep.subr.mxu0 0.0
  %241 = vmatpush1.msra.mxu0 0.0
  %242 = vmatprep.subr.mxu0 0.0
  %243 = vmatpush1.msra.mxu0 0.0
  %244 = vmatprep.subr.mxu0 0.0
  %245 = vmatpush1.msra.mxu0 0.0
  %246 = vmatprep.subr.mxu0 0.0
  %247 = vmatpush1.msra.mxu0 0.0
  %248 = vmatprep.subr.mxu0 0.0
  %249 = vmatpush1.msra.mxu0 0.0
  %250 = vmatprep.subr.mxu0 %v82
  %251 = vmatpush1.msra.mxu0 %v79
  %252 = vmatprep.subr.mxu0 %v54
  %253 = vmatpush1.msra.mxu0 %v53
  %254 = vmatprep.subr.mxu0 %v48
  %255 = vmatpush1.msra.mxu0 %v47
  %256 = vmatprep.subr.mxu0 %v42
  %257 = vmatpush1.msra.mxu0 %v41
  %258 = vmatprep.subr.mxu0 0.0
  %259 = vmatpush2.msra.mxu0 0.0
  %260 = vmatprep.subr.mxu0 0.0
  %261 = vmatpush2.msra.mxu0 0.0
  %262 = vmatprep.subr.mxu0 0.0
  %263 = vmatpush2.msra.mxu0 0.0
  %264 = vmatprep.subr.mxu0 0.0
  %265 = vmatpush2.msra.mxu0 0.0
  %266 = vmatprep.subr.mxu0 0.0
  %267 = vmatpush2.msra.mxu0 0.0
  %268 = vmatprep.subr.mxu0 0.0
  %269 = vmatpush2.msra.mxu0 0.0
  %270 = vmatprep.subr.mxu0 0.0
  %271 = vmatpush2.msra.mxu0 0.0
  %272 = vmatprep.subr.mxu0 0.0
  %273 = vmatpush2.msra.mxu0 0.0
  %274 = vmatprep.subr.mxu0 0.0
  %275 = vmatpush2.msra.mxu0 0.0
  %276 = vmatprep.subr.mxu0 0.0
  %277 = vmatpush2.msra.mxu0 0.0
  %278 = vmatprep.subr.mxu0 0.0
  %279 = vmatpush2.msra.mxu0 0.0
  %280 = vmatprep.subr.mxu0 0.0
  %281 = vmatpush2.msra.mxu0 0.0
  %282 = vmatprep.subr.mxu0 0.0
  %283 = vmatpush2.msra.mxu0 0.0
  %284 = vmatprep.subr.mxu0 0.0
  %285 = vmatpush2.msra.mxu0 0.0
  %286 = vmatprep.subr.mxu0 0.0
  %287 = vmatpush2.msra.mxu0 0.0
  %288 = vmatprep.subr.mxu0 0.0
  %289 = vmatpush2.msra.mxu0 0.0
  %290 = vmatprep.mubr.f32.mxu0 0.0
  %291 = vmatmul.mubr.f32.gmra.mxu0 %v63
  %v292 = vpop.f32.mrf.mxu0
  %v293 = vadd.f32 0.0, %v292
  %v294 = vpop.f32.mrf.mxu0
  %v295 = vadd.f32 0.0, %v294
  %296 = vdwg.mxu0
  %v297 = vld [vmem:[%s34] sm:$0xff]
  %v299 = vcombine.high %v297, %v297
  %v301 = vmul.f32 %v151, %v297
  %v302 = vmul.f32 %v153, %v299
  %v303 = vmul.f32 %v222, %v297
  %v304 = vmul.f32 %v224, %v299
  %v305 = vmul.f32 %v293, %v297
  %v306 = vmul.f32 %v295, %v299
  %vm307 = vcmask 1043456
  %v308 = vsel %vm307, %v301, 0.0
  %v309 = vrot.slane %v308, 4
  %v310 = vadd.f32 %v308, %v309
  %v311 = vrot.slane %v310, 2
  %v312 = vadd.f32 %v310, %v311
  %v313 = vrot.slane %v312, 1
  %v314 = vadd.f32 %v312, %v313
  %v315 = vsel %vm307, %v302, 0.0
  %v316 = vrot.slane %v315, 4
  %v317 = vadd.f32 %v315, %v316
  %v318 = vrot.slane %v317, 2
  %v319 = vadd.f32 %v317, %v318
  %v320 = vrot.slane %v319, 1
  %v321 = vadd.f32 %v319, %v320
  %v322 = vsel %vm307, %v303, 0.0
  %v323 = vrot.slane %v322, 4
  %v324 = vadd.f32 %v322, %v323
  %v325 = vrot.slane %v324, 2
  %v326 = vadd.f32 %v324, %v325
  %v327 = vrot.slane %v326, 1
  %v328 = vadd.f32 %v326, %v327
  %v329 = vsel %vm307, %v304, 0.0
  %v330 = vrot.slane %v329, 4
  %v331 = vadd.f32 %v329, %v330
  %v332 = vrot.slane %v331, 2
  %v333 = vadd.f32 %v331, %v332
  %v334 = vrot.slane %v333, 1
  %v335 = vadd.f32 %v333, %v334
  %v336 = vsel %vm307, %v305, 0.0
  %v337 = vrot.slane %v336, 4
  %v338 = vadd.f32 %v336, %v337
  %v339 = vrot.slane %v338, 2
  %v340 = vadd.f32 %v338, %v339
  %v341 = vrot.slane %v340, 1
  %v342 = vadd.f32 %v340, %v341
  %v343 = vsel %vm307, %v306, 0.0
  %v344 = vrot.slane %v343, 4
  %v345 = vadd.f32 %v343, %v344
  %v346 = vrot.slane %v345, 2
  %v347 = vadd.f32 %v345, %v346
  %v348 = vrot.slane %v347, 1
  %v349 = vadd.f32 %v347, %v348
  %v356 = vcombine.low %v314, %v321
  %v357 = vcombine.low %v328, %v335
  %v358 = vcombine.low %v342, %v349
  %v360 = vunpack.c.l.s4 1966171168
  %v361 = vunpack.c.0.s8 %v360
  %v362 = vlaneseq
  %v363 = vshrl.u32 %v362, 7
  %v364 = vsub.s32 %v361, %v363
  %v365 = vrot.slane %v356, %v364
  %v367 = vunpack.c.l.s4 1966171168
  %v368 = vunpack.c.0.s8 %v367
  %v369 = vlaneseq
  %v370 = vshrl.u32 %v369, 7
  %v371 = vsub.s32 %v368, %v370
  %v372 = vrot.slane %v357, %v371
  %v374 = vunpack.c.l.s4 1966171168
  %v375 = vunpack.c.0.s8 %v374
  %v376 = vlaneseq
  %v377 = vshrl.u32 %v376, 7
  %v378 = vsub.s32 %v375, %v377
  %v379 = vrot.slane %v358, %v378
  %v380 = vcombine.low %v365, %v372
  %v382 = vunpack.c.l.s4 1966171168
  %v383 = vunpack.c.0.s8 %v382
  %v384 = vlaneseq
  %v385 = vshrl.u32 %v384, 7
  %v386 = vsub.s32 %v383, %v385
  %v387 = vrot.slane %v380, %v386
  %v389 = vunpack.c.l.s4 1966171168
  %v390 = vunpack.c.0.s8 %v389
  %v391 = vlaneseq
  %v392 = vshrl.u32 %v391, 7
  %v393 = vsub.s32 %v390, %v392
  %v394 = vrot.slane %v379, %v393
  %v395 = vcombine.low %v387, %v394
  %v397 = vlaneseq
  %vm398 = vcmp.ge.s32.totalorder %v397, 0
  %vm399 = vcmp.lt.s32.totalorder %v397, 768
  %vm400 = vmand %vm398, %vm399
  %401 = vst.msk [vmem:[%s4] sm:$0x3f] %vm400, %v395
  // Predicated region
  $region14: #{_parallax_ic_blur_jit.1} parent=0 // pred_check
    _
  $region15: #{_parallax_ic_blur_jit.1} parent=0 // pred_check_branch
    %403 = sbr.rel (0) target = $region17
  $region16: #{_parallax_ic_blur_jit.1} parent=0 // pred_region
    _
  $region17: #{_parallax_ic_blur_jit.1} parent=0 // pred_fallthru
    _
  // Predicated region
  $region18: #{_parallax_ic_blur_jit.1} parent=0 // pred_check
    _
  $region19: #{_parallax_ic_blur_jit.1} parent=0 // pred_check_branch
    %405 = sbr.rel (0) target = $region21
  $region20: #{_parallax_ic_blur_jit.1} parent=0 // pred_region
    _
  $region21: #{_parallax_ic_blur_jit.1} parent=0 // pred_fallthru
    _

</llo_original>
